<compile_context>
chip_gen: v7x
topology: tpu7x:2x2x1
jax: 0.10.0
libtpu: 0.0.40
codegen_flags: <defaults>
</compile_context>

<pallas_src>
import math

import jax
import jax.numpy as jnp
from jax.experimental import pallas as pl
from jax.experimental.pallas import tpu as pltpu

_MAX_BLOCK_B = 512  # rows per tile for very large batches


def _fourier_features_kernel(x_ref, scales_ref, w_ref, o_ref):
    # x_ref:      (block_b, 1)   one timestep scalar per row
    # scales_ref: (1, H)         H = time_dim // 2, ALREADY includes the 2*pi factor
    # w_ref:      (2H, out_dim)  == weight.T, rows [cos-half ; sin-half], bf16 (or f32)
    # o_ref:      (block_b, out_dim)
    H = scales_ref.shape[1]

    # Outer product in f32 (VPU); transcendentals in f32 (EUP).
    f = x_ref[...].astype(jnp.float32) * scales_ref[...].astype(jnp.float32)  # (b, H)
    cos_f = jnp.cos(f).astype(w_ref.dtype)
    sin_f = jnp.sin(f).astype(w_ref.dtype)

    # Two accumulating K=H dots instead of concat + one K=2H dot: the MXU can
    # start on the cos half while the EUP is still producing the sin half, and
    # no (b, 2H) concat buffer is materialized.  Static slices -> zero cost.
    w_cos = w_ref[:H, :]
    w_sin = w_ref[H:, :]
    acc = jnp.dot(cos_f, w_cos, preferred_element_type=jnp.float32)
    acc = acc + jnp.dot(sin_f, w_sin, preferred_element_type=jnp.float32)
    o_ref[...] = acc.astype(o_ref.dtype)


def prepare_fourier_params(scales, weight, *, param_dtype=jnp.bfloat16):
    """One-time parameter prep (do at init, not per call).

    scales: (time_dim//2, 1)   -> scales_row: (1, H) f32 with 2*pi folded in
    weight: (out_dim, time_dim) -> w_stacked: (2H, out_dim) = weight.T in param_dtype
            (first H rows multiply cos features, last H rows multiply sin features)
    """
    scales_row = (2.0 * math.pi) * scales.T.astype(jnp.float32)
    w_stacked = weight.T.astype(param_dtype)
    return scales_row, w_stacked


def fourier_features(x, scales_row, w_stacked, *, max_block_b=_MAX_BLOCK_B):
    """x: (B, 1) f32; scales_row: (1, H) f32 (2*pi folded); w_stacked: (2H, out_dim)."""
    B = x.shape[0]
    H = scales_row.shape[1]
    two_h, out_dim = w_stacked.shape
    assert two_h == 2 * H

    # One tile = whole batch (rounded up to an 8-row sublane multiple) when it is
    # small; 512-row tiles otherwise.  Fewer, bigger tiles amortize the ~0.35 us
    # per-step pipeline overhead and avoid sub-descriptor-size x DMAs.
    if B <= max_block_b:
        block_b = max(8, pl.cdiv(B, 8) * 8)
    else:
        block_b = max_block_b
    padded_b = pl.cdiv(B, block_b) * block_b
    x_p = x if padded_b == B else jnp.pad(x, ((0, padded_b - B), (0, 0)))
    grid_b = padded_b // block_b

    x_itemsize = jnp.dtype(jnp.float32).itemsize
    w_itemsize = jnp.dtype(w_stacked.dtype).itemsize
    cost = pl.CostEstimate(
        flops=2 * padded_b * two_h * out_dim,
        transcendentals=2 * padded_b * H,
        bytes_accessed=(padded_b * 1 + H + padded_b * out_dim) * x_itemsize
        + two_h * out_dim * w_itemsize,
    )

    out = pl.pallas_call(
        _fourier_features_kernel,
        out_shape=jax.ShapeDtypeStruct((padded_b, out_dim), x.dtype),
        grid=(grid_b,),
        in_specs=[
            pl.BlockSpec((block_b, 1), lambda i: (i, 0)),
            pl.BlockSpec((1, H), lambda i: (0, 0)),
            pl.BlockSpec((two_h, out_dim), lambda i: (0, 0)),
        ],
        out_specs=pl.BlockSpec((block_b, out_dim), lambda i: (i, 0)),
        compiler_params=pltpu.CompilerParams(
            dimension_semantics=("parallel",)),  # batch tiles -> 2nd TC on v7x
        cost_estimate=cost,
    )(x_p, scales_row, w_stacked)

    return out if padded_b == B else out[:B]


def fourier_features_ref(x, scales, weight):
    """Pure-JAX f32 reference (mirrors the PyTorch forward)."""
    f = 2.0 * math.pi * x @ scales.T
    fouriered = jnp.concatenate([jnp.cos(f), jnp.sin(f)], axis=-1)
    return fouriered @ weight.T


if __name__ == "__main__":
    # Small but lane-dense config: time_dim=256 (H=128), out_dim=128, std=1.0, B=16.
    time_dim = 256
    out_dim = 128
    std = 1.0
    B = 16

    key = jax.random.PRNGKey(0)
    k_scales, k_w, k_x = jax.random.split(key, 3)

    # Deterministic "init": scales ~ N(0, std), weight ~ N(0, 0.02), no bias.
    scales = jax.random.normal(k_scales, (time_dim // 2, 1), jnp.float32) * std
    weight = jax.random.normal(k_w, (out_dim, time_dim), jnp.float32) * 0.02

    # Input: one timestep scalar per batch element -> shape (B, 1).
    x = jax.random.normal(k_x, (B, 1), jnp.float32)

    # Hoisted, one-time parameter prep (2*pi folded into scales, bf16 weight).
    scales_row, w_stacked = prepare_fourier_params(scales, weight)

    out = fourier_features(x, scales_row, w_stacked)
    out = jax.block_until_ready(out)

    ref = fourier_features_ref(x, scales, weight)
    assert out.shape == (B, out_dim)
    # Tolerance relaxed for bf16 matmul operands (f32 accumulation); use
    # prepare_fourier_params(..., param_dtype=jnp.float32) for a 1e-5 debug path.
    assert jnp.allclose(out, ref, atol=1e-2, rtol=1e-2), "mismatch vs reference"

    print("KERNEL_OK")
</pallas_src>

<mosaic_0001>
module attributes {stable_mosaic.version = 11 : i64} {
  func.func @_fourier_features_kernel(%arg0: i32, %arg1: memref<16x1xf32, #tpu.memory_space<vmem>>, %arg2: memref<1x128xf32, #tpu.memory_space<vmem>>, %arg3: memref<256x128xbf16, #tpu.memory_space<vmem>>, %arg4: memref<16x128xf32, #tpu.memory_space<vmem>>) attributes {dimension_semantics = [#tpu.dimension_semantics<parallel>], iteration_bounds = array<i64: 1>, scalar_prefetch = 0 : i64, scratch_operands = 0 : i64, tpu.core_type = #tpu.core_type<tc>, window_params = [{transform_indices = @transform_0, window_bounds = array<i64: 16, 1>}, {pipeline_mode = #tpu.pipeline_mode<synchronous>, transform_indices = @transform_1, window_bounds = array<i64: 1, 128>}, {pipeline_mode = #tpu.pipeline_mode<synchronous>, transform_indices = @transform_2, window_bounds = array<i64: 256, 128>}, {transform_indices = @transform_3, window_bounds = array<i64: 16, 128>}]} {
    %c0 = arith.constant 0 : index
    %c0_0 = arith.constant 0 : index
    %0 = vector.load %arg1[%c0, %c0_0] : memref<16x1xf32, #tpu.memory_space<vmem>>, vector<16x1xf32>
    %c0_1 = arith.constant 0 : index
    %c0_2 = arith.constant 0 : index
    %1 = vector.load %arg2[%c0_1, %c0_2] : memref<1x128xf32, #tpu.memory_space<vmem>>, vector<1x128xf32>
    %2 = vector.broadcast %0 : vector<16x1xf32> to vector<16x128xf32>
    %3 = vector.broadcast %1 : vector<1x128xf32> to vector<16x128xf32>
    %4 = arith.mulf %2, %3 : vector<16x128xf32>
    %5 = math.cos %4 : vector<16x128xf32>
    %6 = arith.truncf %5 : vector<16x128xf32> to vector<16x128xbf16>
    %7 = math.sin %4 : vector<16x128xf32>
    %8 = arith.truncf %7 : vector<16x128xf32> to vector<16x128xbf16>
    %c0_3 = arith.constant 0 : index
    %c0_4 = arith.constant 0 : index
    %9 = vector.load %arg3[%c0_3, %c0_4] : memref<256x128xbf16, #tpu.memory_space<vmem>>, vector<128x128xbf16>
    %c128 = arith.constant 128 : index
    %c0_5 = arith.constant 0 : index
    %10 = vector.load %arg3[%c128, %c0_5] : memref<256x128xbf16, #tpu.memory_space<vmem>>, vector<128x128xbf16>
    %cst = arith.constant dense<0.000000e+00> : vector<16x128xf32>
    %11 = tpu.matmul %6, %9, %cst {dimension_numbers = #tpu.dot_dimension_numbers<[1], [0], [0], [1], [0, 0, 1, 1], [], []>} : vector<16x128xbf16>, vector<128x128xbf16>, vector<16x128xf32> -> vector<16x128xf32>
    %cst_6 = arith.constant dense<0.000000e+00> : vector<16x128xf32>
    %12 = tpu.matmul %8, %10, %cst_6 {dimension_numbers = #tpu.dot_dimension_numbers<[1], [0], [0], [1], [0, 0, 1, 1], [], []>} : vector<16x128xbf16>, vector<128x128xbf16>, vector<16x128xf32> -> vector<16x128xf32>
    %13 = arith.addf %11, %12 : vector<16x128xf32>
    %c0_7 = arith.constant 0 : index
    %c0_8 = arith.constant 0 : index
    %14 = vector.load %arg4[%c0_7, %c0_8] : memref<16x128xf32, #tpu.memory_space<vmem>>, vector<16x128xf32>
    tpu.vector_store %arg4[%c0_7, %c0_8], %13 {strides = array<i32>} : memref<16x128xf32, #tpu.memory_space<vmem>>, vector<16x128xf32>,
    return
  }
  func.func @transform_0(%arg0: i32) -> (i32, i32) {
    %c0_i32 = arith.constant 0 : i32
    %c0_i32_0 = arith.constant 0 : i32
    return %arg0, %c0_i32 : i32, i32
  }
  func.func @transform_1(%arg0: i32) -> (i32, i32) {
    %c0_i32 = arith.constant 0 : i32
    %c0_i32_0 = arith.constant 0 : i32
    %c0_i32_1 = arith.constant 0 : i32
    return %c0_i32, %c0_i32_0 : i32, i32
  }
  func.func @transform_2(%arg0: i32) -> (i32, i32) {
    %c0_i32 = arith.constant 0 : i32
    %c0_i32_0 = arith.constant 0 : i32
    %c0_i32_1 = arith.constant 0 : i32
    return %c0_i32, %c0_i32_0 : i32, i32
  }
  func.func @transform_3(%arg0: i32) -> (i32, i32) {
    %c0_i32 = arith.constant 0 : i32
    %c0_i32_0 = arith.constant 0 : i32
    return %arg0, %c0_i32 : i32, i32
  }
}

</mosaic_0001>

<llo_original>
// kernel: tpu_custom_call.1
$region0: #{tpu_custom_call.1}
  #allocation0 [shape = 'u32[]', space=smem, size = 0x4, offset = 0x4, fixed_abs, tag = 'smem constant byte address 0x4 - core index']
  #allocation1 [shape = 'u32[144,128]{1,0:T(1,128)}', space=vmem, size = 0x12000, scoped, tag = 'internal scratch']
  %s0 = inlined_call_operand.vmem [shape: f32[16,1], index: 0, kind: input, shape index: {}]
  %s1 = inlined_call_operand.vmem [shape: f32[1,128], index: 1, kind: input, shape index: {}]
  %s2 = inlined_call_operand.hbm [shape: bf16[256,128], index: 2, kind: input, shape index: {}]
  %s3 = inlined_call_operand.hbm [shape: f32[16,128], index: 3, kind: output, shape index: {}]
  %s4 = sld [smem:[#allocation0]]
  $region26: #{tpu_custom_call.1} parent=0
    _
  %s6 = ssub.s32 1, %s4
  %s7 = scalar_select 0, %s6, %s4
  $region1: #{tpu_custom_call.1} parent=0
    #allocation2 [shape = 'u8[65536]{0}', space=vmem, size = 0x10000, scoped, tag = 'input window, operand 2, single buffered']
    #allocation3 [shape = 's32[1]{0}', space=sflag, size = 0x4, scoped, tag = 'scoped memory for tpu_custom_call.1']
    #allocation4 [shape = 's32[1]{0}', space=sflag, size = 0x4, scoped, tag = 'scoped memory for tpu_custom_call.1']
    #allocation5 [shape = 'u8[8192]{0}', space=vmem, size = 0x2000, scoped, tag = 'output window, operand 0, single buffered']
    %8 = vsyncpa [#allocation3], 0
    %9 = vsyncpa [#allocation4], 0
    // Predicated region
    $region2: #{tpu_custom_call.1} parent=1 // pred_check
      _
    $region3: #{tpu_custom_call.1} parent=1 // pred_check_branch
      %11 = sbr.rel (0) target = $region5
    $region4: #{tpu_custom_call.1} parent=1 // pred_region
      _
    $region5: #{tpu_custom_call.1} parent=1 // pred_fallthru
      _
    // Predicated region
    $region6: #{tpu_custom_call.1} parent=1 // pred_check
      _
    $region7: #{tpu_custom_call.1} parent=1 // pred_check_branch
      %13 = sbr.rel (0) target = $region9
    $region8: #{tpu_custom_call.1} parent=1 // pred_region
      _
    $region9: #{tpu_custom_call.1} parent=1 // pred_fallthru
      _
    // Predicated region
    $region10: #{tpu_custom_call.1} parent=1 // pred_check
      _
    $region11: #{tpu_custom_call.1} parent=1 // pred_check_branch
      %15 = sbr.rel (0) target = $region13
    $region12: #{tpu_custom_call.1} parent=1 // pred_region
      %s17 = ssub.s32 2048, 2048
      %18 = vsyncadd [#allocation3], %s17
      %s19 = sshll.u32 [#allocation2], 4
      %s20 = int_to_ptr.vmem [resolvable:$true] %s19
      %25 = dma.hbm_to_vmem [thread:$0]  %s2, 2048, %s20, [#allocation3], 64, 64, 4
    $region13: #{tpu_custom_call.1} parent=1 // pred_fallthru
      _
    // Predicated region
    $region14: #{tpu_custom_call.1} parent=1 // pred_check
      _
    $region15: #{tpu_custom_call.1} parent=1 // pred_check_branch
      %27 = sbr.rel (0) target = $region17
    $region16: #{tpu_custom_call.1} parent=1 // pred_region
      %28 = dma.done [#allocation3], 2048
    $region17: #{tpu_custom_call.1} parent=1 // pred_fallthru
      _
    %v30 = vld [vmem:[%s0] sm:$0xff]
    %v31 = vld [vmem:[%s0 + $0x8] sm:$0xff]
    %v32 = vld [vmem:[%s1] sm:$0x1]
    %34 = vset.pattern.permute.xlu0 0
    %35 = vperm.xlu0 %34, %v30
    %v36 = vpop.permute.xlu0 %35
    %39 = vset.pattern.permute.xlu0 0
    %40 = vperm.xlu0 %39, %v31
    %v41 = vpop.permute.xlu0 %40
    %v44 = vlaneseq
    %v45 = vshrl.u32 %v44, 7
    %v46 = vsub.s32 0, %v45
    %v47 = vrot.slane %v32, %v46
    %v49 = vmul.f32 %v36, %v47
    %v50 = vmul.f32 %v41, %v47
    %v51 = vand.u32 2147483647, %v49
    %vm52 = vcmp.le.f32.partialorder %v51, 0.7853982
    %vm53 = vcmp.lt.s32.totalorder %v49, 0
    %v54 = vand.u32 %v49, 2139095040
    %v55 = vshrl.u32 %v54, 23
    %v56 = vsub.s32 %v55, 127
    %v57 = vand.u32 2147483647, %v49
    %v58 = vand.u32 %v57, 8388607
    %v59 = vor.u32 %v58, 8388608
    %v60 = vsub.s32 0, %v59
    %v61 = vadd.s32 %v56, 1
    %vm62 = vcmp.gt.s32.totalorder %v61, 0
    %v63 = vsel %vm62, %v61, 0
    %v64 = vshrl.u32 %v63, 5
    %v65 = vand.u32 %v63, 31
    %v66 = vsub.s32 32, %v65
    %v67 = vshrl.u32 683565275, %v66
    %v68 = vshll.u32 683565275, %v65
    %v69 = vshrl.u32 2475754826, %v66
    %v70 = vor.u32 %v68, %v69
    %v71 = vshll.u32 2475754826, %v65
    %v72 = vshrl.u32 2131351028, %v66
    %v73 = vor.u32 %v71, %v72
    %v74 = vshll.u32 2131351028, %v65
    %v75 = vshrl.u32 2102212464, %v66
    %v76 = vor.u32 %v74, %v75
    %v77 = vshll.u32 2102212464, %v65
    %v78 = vshrl.u32 920167782, %v66
    %v79 = vor.u32 %v77, %v78
    %v80 = vshll.u32 920167782, %v65
    %v81 = vshrl.u32 1326507024, %v66
    %v82 = vor.u32 %v80, %v81
    %vm83 = vcmp.lt.s32.totalorder %v64, 1
    %vm84 = vcmp.lt.s32.totalorder %v64, 2
    %vm85 = vcmp.lt.s32.totalorder %v64, 3
    %vm86 = vcmp.lt.s32.totalorder %v64, 4
    %v87 = vsel %vm83, %v67, %v70
    %v88 = vsel %vm86, %v76, 2102212464
    %v89 = vsel %vm85, %v73, %v88
    %v90 = vsel %vm84, %v87, %v89
    %v91 = vsel %vm83, %v70, %v73
    %v92 = vsel %vm86, %v79, 920167782
    %v93 = vsel %vm85, %v76, %v92
    %v94 = vsel %vm84, %v91, %v93
    %v95 = vsel %vm83, %v73, %v76
    %v96 = vsel %vm86, %v82, 1326507024
    %v97 = vsel %vm85, %v79, %v96
    %v98 = vsel %vm84, %v95, %v97
    %v99 = vshll.u32 %v59, 8
    %v100 = vmul.u32.u64.compose %v99, %v98
    %v101 = vextract.low.u32 %v100
    %v102 = vextract.high.u32 %v100
    %v103 = vmul.u32.u64.compose %v99, %v94
    %v104 = vextract.low.u32 %v103
    %v105 = vextract.high.u32 %v103
    %v106 = vmul.u32 %v99, %v90
    %v107 = vadd.s32 %v102, %v104
    %vm108 = vc.u32 %v102, %v104
    %v109 = vadd.s32 %v105, 1
    %v110 = vsel %vm108, %v109, %v105
    %v111 = vadd.s32 %v106, %v110
    %v112 = vadd.s32 %v111, 536870912
    %v113 = vshrl.u32 %v112, 30
    %v114 = vshll.u32 %v113, 30
    %v115 = vsub.s32 %v111, %v114
    %vm116 = vcmp.lt.s32.totalorder %v115, 0
    %v117 = vsub.s32 0, %v115
    %v118 = vsel %vm116, %v117, %v115
    %v119 = vclz %v118
    %v120 = vsub.s32 %v119, 2
    %vm121 = vcmp.gt.s32.totalorder 0, %v120
    %v122 = vsel %vm121, 0, %v120
    %v123 = vsub.s32 32, %v122
    %v124 = vshll.u32 %v115, %v122
    %v125 = vshrl.u32 %v107, %v123
    %v126 = vor.u32 %v124, %v125
    %v127 = vsub.s32 4294967266, %v122
    %v128 = vadd.s32 %v127, 127
    %v129 = vshll.u32 %v128, 23
    %v130 = vor.u32 4788187, %v129
    %v131 = vand.u32 2147483647, %v130
    %v133 = vcvt.s32.f32 %v126
    %v134 = vmul.f32 %v133, %v131
    %v135 = vxor.u32 %v134, 2147483648
    %v136 = vsel %vm53, %v135, %v134
    %v137 = vsub.s32 4, %v113
    %v138 = vsel %vm53, %v137, %v113
    %v139 = vsel %vm52, %v49, %v136
    %v140 = vsel %vm52, 0, %v138
    %v141 = vcosq.f32.pop %v139
    %v142 = vsinq.f32.pop %v139
    %vm143 = vweird.f32 %v49
    %v144 = vand.u32 %v140, 3
    %vm145 = vcmp.lt.s32.totalorder %v144, 2
    %vm146 = vcmp.eq.s32.totalorder %v144, 0
    %v147 = vxor.u32 %v142, 2147483648
    %v148 = vsel %vm146, %v141, %v147
    %vm149 = vcmp.eq.s32.totalorder %v144, 2
    %v150 = vxor.u32 %v141, 2147483648
    %v151 = vsel %vm149, %v150, %v142
    %v152 = vsel %vm145, %v148, %v151
    %v153 = vsel %vm143, nan, %v152
    %v154 = vand.u32 2147483647, %v50
    %vm155 = vcmp.le.f32.partialorder %v154, 0.7853982
    %vm156 = vcmp.lt.s32.totalorder %v50, 0
    %v157 = vand.u32 %v50, 2139095040
    %v158 = vshrl.u32 %v157, 23
    %v159 = vsub.s32 %v158, 127
    %v160 = vand.u32 2147483647, %v50
    %v161 = vand.u32 %v160, 8388607
    %v162 = vor.u32 %v161, 8388608
    %v163 = vsub.s32 0, %v162
    %v164 = vadd.s32 %v159, 1
    %vm165 = vcmp.gt.s32.totalorder %v164, 0
    %v166 = vsel %vm165, %v164, 0
    %v167 = vshrl.u32 %v166, 5
    %v168 = vand.u32 %v166, 31
    %v169 = vsub.s32 32, %v168
    %v170 = vshrl.u32 683565275, %v169
    %v171 = vshll.u32 683565275, %v168
    %v172 = vshrl.u32 2475754826, %v169
    %v173 = vor.u32 %v171, %v172
    %v174 = vshll.u32 2475754826, %v168
    %v175 = vshrl.u32 2131351028, %v169
    %v176 = vor.u32 %v174, %v175
    %v177 = vshll.u32 2131351028, %v168
    %v178 = vshrl.u32 2102212464, %v169
    %v179 = vor.u32 %v177, %v178
    %v180 = vshll.u32 2102212464, %v168
    %v181 = vshrl.u32 920167782, %v169
    %v182 = vor.u32 %v180, %v181
    %v183 = vshll.u32 920167782, %v168
    %v184 = vshrl.u32 1326507024, %v169
    %v185 = vor.u32 %v183, %v184
    %vm186 = vcmp.lt.s32.totalorder %v167, 1
    %vm187 = vcmp.lt.s32.totalorder %v167, 2
    %vm188 = vcmp.lt.s32.totalorder %v167, 3
    %vm189 = vcmp.lt.s32.totalorder %v167, 4
    %v190 = vsel %vm186, %v170, %v173
    %v191 = vsel %vm189, %v179, 2102212464
    %v192 = vsel %vm188, %v176, %v191
    %v193 = vsel %vm187, %v190, %v192
    %v194 = vsel %vm186, %v173, %v176
    %v195 = vsel %vm189, %v182, 920167782
    %v196 = vsel %vm188, %v179, %v195
    %v197 = vsel %vm187, %v194, %v196
    %v198 = vsel %vm186, %v176, %v179
    %v199 = vsel %vm189, %v185, 1326507024
    %v200 = vsel %vm188, %v182, %v199
    %v201 = vsel %vm187, %v198, %v200
    %v202 = vshll.u32 %v162, 8
    %v203 = vmul.u32.u64.compose %v202, %v201
    %v204 = vextract.low.u32 %v203
    %v205 = vextract.high.u32 %v203
    %v206 = vmul.u32.u64.compose %v202, %v197
    %v207 = vextract.low.u32 %v206
    %v208 = vextract.high.u32 %v206
    %v209 = vmul.u32 %v202, %v193
    %v210 = vadd.s32 %v205, %v207
    %vm211 = vc.u32 %v205, %v207
    %v212 = vadd.s32 %v208, 1
    %v213 = vsel %vm211, %v212, %v208
    %v214 = vadd.s32 %v209, %v213
    %v215 = vadd.s32 %v214, 536870912
    %v216 = vshrl.u32 %v215, 30
    %v217 = vshll.u32 %v216, 30
    %v218 = vsub.s32 %v214, %v217
    %vm219 = vcmp.lt.s32.totalorder %v218, 0
    %v220 = vsub.s32 0, %v218
    %v221 = vsel %vm219, %v220, %v218
    %v222 = vclz %v221
    %v223 = vsub.s32 %v222, 2
    %vm224 = vcmp.gt.s32.totalorder 0, %v223
    %v225 = vsel %vm224, 0, %v223
    %v226 = vsub.s32 32, %v225
    %v227 = vshll.u32 %v218, %v225
    %v228 = vshrl.u32 %v210, %v226
    %v229 = vor.u32 %v227, %v228
    %v230 = vsub.s32 4294967266, %v225
    %v231 = vadd.s32 %v230, 127
    %v232 = vshll.u32 %v231, 23
    %v233 = vor.u32 4788187, %v232
    %v234 = vand.u32 2147483647, %v233
    %v236 = vcvt.s32.f32 %v229
    %v237 = vmul.f32 %v236, %v234
    %v238 = vxor.u32 %v237, 2147483648
    %v239 = vsel %vm156, %v238, %v237
    %v240 = vsub.s32 4, %v216
    %v241 = vsel %vm156, %v240, %v216
    %v242 = vsel %vm155, %v50, %v239
    %v243 = vsel %vm155, 0, %v241
    %v244 = vcosq.f32.pop %v242
    %v245 = vsinq.f32.pop %v242
    %vm246 = vweird.f32 %v50
    %v247 = vand.u32 %v243, 3
    %vm248 = vcmp.lt.s32.totalorder %v247, 2
    %vm249 = vcmp.eq.s32.totalorder %v247, 0
    %v250 = vxor.u32 %v245, 2147483648
    %v251 = vsel %vm249, %v244, %v250
    %vm252 = vcmp.eq.s32.totalorder %v247, 2
    %v253 = vxor.u32 %v244, 2147483648
    %v254 = vsel %vm252, %v253, %v245
    %v255 = vsel %vm248, %v251, %v254
    %v256 = vsel %vm246, nan, %v255
    %v257 = vpack.c.bf16 %v256, %v153
    %v258 = vand.u32 2147483647, %v49
    %vm259 = vcmp.le.f32.partialorder %v258, 0.7853982
    %vm260 = vcmp.lt.s32.totalorder %v49, 0
    %v261 = vand.u32 %v49, 2139095040
    %v262 = vshrl.u32 %v261, 23
    %v263 = vsub.s32 %v262, 127
    %v264 = vand.u32 2147483647, %v49
    %v265 = vand.u32 %v264, 8388607
    %v266 = vor.u32 %v265, 8388608
    %v267 = vsub.s32 0, %v266
    %v268 = vadd.s32 %v263, 1
    %vm269 = vcmp.gt.s32.totalorder %v268, 0
    %v270 = vsel %vm269, %v268, 0
    %v271 = vshrl.u32 %v270, 5
    %v272 = vand.u32 %v270, 31
    %v273 = vsub.s32 32, %v272
    %v274 = vshrl.u32 683565275, %v273
    %v275 = vshll.u32 683565275, %v272
    %v276 = vshrl.u32 2475754826, %v273
    %v277 = vor.u32 %v275, %v276
    %v278 = vshll.u32 2475754826, %v272
    %v279 = vshrl.u32 2131351028, %v273
    %v280 = vor.u32 %v278, %v279
    %v281 = vshll.u32 2131351028, %v272
    %v282 = vshrl.u32 2102212464, %v273
    %v283 = vor.u32 %v281, %v282
    %v284 = vshll.u32 2102212464, %v272
    %v285 = vshrl.u32 920167782, %v273
    %v286 = vor.u32 %v284, %v285
    %v287 = vshll.u32 920167782, %v272
    %v288 = vshrl.u32 1326507024, %v273
    %v289 = vor.u32 %v287, %v288
    %vm290 = vcmp.lt.s32.totalorder %v271, 1
    %vm291 = vcmp.lt.s32.totalorder %v271, 2
    %vm292 = vcmp.lt.s32.totalorder %v271, 3
    %vm293 = vcmp.lt.s32.totalorder %v271, 4
    %v294 = vsel %vm290, %v274, %v277
    %v295 = vsel %vm293, %v283, 2102212464
    %v296 = vsel %vm292, %v280, %v295
    %v297 = vsel %vm291, %v294, %v296
    %v298 = vsel %vm290, %v277, %v280
    %v299 = vsel %vm293, %v286, 920167782
    %v300 = vsel %vm292, %v283, %v299
    %v301 = vsel %vm291, %v298, %v300
    %v302 = vsel %vm290, %v280, %v283
    %v303 = vsel %vm293, %v289, 1326507024
    %v304 = vsel %vm292, %v286, %v303
    %v305 = vsel %vm291, %v302, %v304
    %v306 = vshll.u32 %v266, 8
    %v307 = vmul.u32.u64.compose %v306, %v305
    %v308 = vextract.low.u32 %v307
    %v309 = vextract.high.u32 %v307
    %v310 = vmul.u32.u64.compose %v306, %v301
    %v311 = vextract.low.u32 %v310
    %v312 = vextract.high.u32 %v310
    %v313 = vmul.u32 %v306, %v297
    %v314 = vadd.s32 %v309, %v311
    %vm315 = vc.u32 %v309, %v311
    %v316 = vadd.s32 %v312, 1
    %v317 = vsel %vm315, %v316, %v312
    %v318 = vadd.s32 %v313, %v317
    %v319 = vadd.s32 %v318, 536870912
    %v320 = vshrl.u32 %v319, 30
    %v321 = vshll.u32 %v320, 30
    %v322 = vsub.s32 %v318, %v321
    %vm323 = vcmp.lt.s32.totalorder %v322, 0
    %v324 = vsub.s32 0, %v322
    %v325 = vsel %vm323, %v324, %v322
    %v326 = vclz %v325
    %v327 = vsub.s32 %v326, 2
    %vm328 = vcmp.gt.s32.totalorder 0, %v327
    %v329 = vsel %vm328, 0, %v327
    %v330 = vsub.s32 32, %v329
    %v331 = vshll.u32 %v322, %v329
    %v332 = vshrl.u32 %v314, %v330
    %v333 = vor.u32 %v331, %v332
    %v334 = vsub.s32 4294967266, %v329
    %v335 = vadd.s32 %v334, 127
    %v336 = vshll.u32 %v335, 23
    %v337 = vor.u32 4788187, %v336
    %v338 = vand.u32 2147483647, %v337
    %v340 = vcvt.s32.f32 %v333
    %v341 = vmul.f32 %v340, %v338
    %v342 = vxor.u32 %v341, 2147483648
    %v343 = vsel %vm260, %v342, %v341
    %v344 = vsub.s32 4, %v320
    %v345 = vsel %vm260, %v344, %v320
    %v346 = vsel %vm259, %v49, %v343
    %v347 = vsel %vm259, 0, %v345
    %v348 = vcosq.f32.pop %v346
    %v349 = vsinq.f32.pop %v346
    %vm350 = vweird.f32 %v49
    %v351 = vadd.s32 %v347, 3
    %v352 = vand.u32 %v351, 3
    %vm353 = vcmp.lt.s32.totalorder %v352, 2
    %vm354 = vcmp.eq.s32.totalorder %v352, 0
    %v355 = vxor.u32 %v349, 2147483648
    %v356 = vsel %vm354, %v348, %v355
    %vm357 = vcmp.eq.s32.totalorder %v352, 2
    %v358 = vxor.u32 %v348, 2147483648
    %v359 = vsel %vm357, %v358, %v349
    %v360 = vsel %vm353, %v356, %v359
    %v361 = vsel %vm350, nan, %v360
    %v362 = vand.u32 2147483647, %v50
    %vm363 = vcmp.le.f32.partialorder %v362, 0.7853982
    %vm364 = vcmp.lt.s32.totalorder %v50, 0
    %v365 = vand.u32 %v50, 2139095040
    %v366 = vshrl.u32 %v365, 23
    %v367 = vsub.s32 %v366, 127
    %v368 = vand.u32 2147483647, %v50
    %v369 = vand.u32 %v368, 8388607
    %v370 = vor.u32 %v369, 8388608
    %v371 = vsub.s32 0, %v370
    %v372 = vadd.s32 %v367, 1
    %vm373 = vcmp.gt.s32.totalorder %v372, 0
    %v374 = vsel %vm373, %v372, 0
    %v375 = vshrl.u32 %v374, 5
    %v376 = vand.u32 %v374, 31
    %v377 = vsub.s32 32, %v376
    %v378 = vshrl.u32 683565275, %v377
    %v379 = vshll.u32 683565275, %v376
    %v380 = vshrl.u32 2475754826, %v377
    %v381 = vor.u32 %v379, %v380
    %v382 = vshll.u32 2475754826, %v376
    %v383 = vshrl.u32 2131351028, %v377
    %v384 = vor.u32 %v382, %v383
    %v385 = vshll.u32 2131351028, %v376
    %v386 = vshrl.u32 2102212464, %v377
    %v387 = vor.u32 %v385, %v386
    %v388 = vshll.u32 2102212464, %v376
    %v389 = vshrl.u32 920167782, %v377
    %v390 = vor.u32 %v388, %v389
    %v391 = vshll.u32 920167782, %v376
    %v392 = vshrl.u32 1326507024, %v377
    %v393 = vor.u32 %v391, %v392
    %vm394 = vcmp.lt.s32.totalorder %v375, 1
    %vm395 = vcmp.lt.s32.totalorder %v375, 2
    %vm396 = vcmp.lt.s32.totalorder %v375, 3
    %vm397 = vcmp.lt.s32.totalorder %v375, 4
    %v398 = vsel %vm394, %v378, %v381
    %v399 = vsel %vm397, %v387, 2102212464
    %v400 = vsel %vm396, %v384, %v399
    %v401 = vsel %vm395, %v398, %v400
    %v402 = vsel %vm394, %v381, %v384
    %v403 = vsel %vm397, %v390, 920167782
    %v404 = vsel %vm396, %v387, %v403
    %v405 = vsel %vm395, %v402, %v404
    %v406 = vsel %vm394, %v384, %v387
    %v407 = vsel %vm397, %v393, 1326507024
    %v408 = vsel %vm396, %v390, %v407
    %v409 = vsel %vm395, %v406, %v408
    %v410 = vshll.u32 %v370, 8
    %v411 = vmul.u32.u64.compose %v410, %v409
    %v412 = vextract.low.u32 %v411
    %v413 = vextract.high.u32 %v411
    %v414 = vmul.u32.u64.compose %v410, %v405
    %v415 = vextract.low.u32 %v414
    %v416 = vextract.high.u32 %v414
    %v417 = vmul.u32 %v410, %v401
    %v418 = vadd.s32 %v413, %v415
    %vm419 = vc.u32 %v413, %v415
    %v420 = vadd.s32 %v416, 1
    %v421 = vsel %vm419, %v420, %v416
    %v422 = vadd.s32 %v417, %v421
    %v423 = vadd.s32 %v422, 536870912
    %v424 = vshrl.u32 %v423, 30
    %v425 = vshll.u32 %v424, 30
    %v426 = vsub.s32 %v422, %v425
    %vm427 = vcmp.lt.s32.totalorder %v426, 0
    %v428 = vsub.s32 0, %v426
    %v429 = vsel %vm427, %v428, %v426
    %v430 = vclz %v429
    %v431 = vsub.s32 %v430, 2
    %vm432 = vcmp.gt.s32.totalorder 0, %v431
    %v433 = vsel %vm432, 0, %v431
    %v434 = vsub.s32 32, %v433
    %v435 = vshll.u32 %v426, %v433
    %v436 = vshrl.u32 %v418, %v434
    %v437 = vor.u32 %v435, %v436
    %v438 = vsub.s32 4294967266, %v433
    %v439 = vadd.s32 %v438, 127
    %v440 = vshll.u32 %v439, 23
    %v441 = vor.u32 4788187, %v440
    %v442 = vand.u32 2147483647, %v441
    %v444 = vcvt.s32.f32 %v437
    %v445 = vmul.f32 %v444, %v442
    %v446 = vxor.u32 %v445, 2147483648
    %v447 = vsel %vm364, %v446, %v445
    %v448 = vsub.s32 4, %v424
    %v449 = vsel %vm364, %v448, %v424
    %v450 = vsel %vm363, %v50, %v447
    %v451 = vsel %vm363, 0, %v449
    %v452 = vcosq.f32.pop %v450
    %v453 = vsinq.f32.pop %v450
    %vm454 = vweird.f32 %v50
    %v455 = vadd.s32 %v451, 3
    %v456 = vand.u32 %v455, 3
    %vm457 = vcmp.lt.s32.totalorder %v456, 2
    %vm458 = vcmp.eq.s32.totalorder %v456, 0
    %v459 = vxor.u32 %v453, 2147483648
    %v460 = vsel %vm458, %v452, %v459
    %vm461 = vcmp.eq.s32.totalorder %v456, 2
    %v462 = vxor.u32 %v452, 2147483648
    %v463 = vsel %vm461, %v462, %v453
    %v464 = vsel %vm457, %v460, %v463
    %v465 = vsel %vm454, nan, %v464
    %v466 = vpack.c.bf16 %v465, %v361
    %v467 = vld [vmem:[#allocation2] sm:$0xf]
    %v468 = vld [vmem:[#allocation2 + $0x4] sm:$0xf]
    %v469 = vld [vmem:[#allocation2 + $0x8] sm:$0xf]
    %v470 = vld [vmem:[#allocation2 + $0xc] sm:$0xf]
    %v471 = vld [vmem:[#allocation2 + $0x10] sm:$0xf]
    %v472 = vld [vmem:[#allocation2 + $0x14] sm:$0xf]
    %v473 = vld [vmem:[#allocation2 + $0x18] sm:$0xf]
    %v474 = vld [vmem:[#allocation2 + $0x1c] sm:$0xf]
    %v475 = vld [vmem:[#allocation2 + $0x20] sm:$0xf]
    %v476 = vld [vmem:[#allocation2 + $0x24] sm:$0xf]
    %v477 = vld [vmem:[#allocation2 + $0x28] sm:$0xf]
    %v478 = vld [vmem:[#allocation2 + $0x2c] sm:$0xf]
    %v479 = vld [vmem:[#allocation2 + $0x30] sm:$0xf]
    %v480 = vld [vmem:[#allocation2 + $0x34] sm:$0xf]
    %v481 = vld [vmem:[#allocation2 + $0x38] sm:$0xf]
    %v482 = vld [vmem:[#allocation2 + $0x3c] sm:$0xf]
    %v483 = vld [vmem:[#allocation2 + $0x40] sm:$0xf]
    %v484 = vld [vmem:[#allocation2 + $0x44] sm:$0xf]
    %v485 = vld [vmem:[#allocation2 + $0x48] sm:$0xf]
    %v486 = vld [vmem:[#allocation2 + $0x4c] sm:$0xf]
    %v487 = vld [vmem:[#allocation2 + $0x50] sm:$0xf]
    %v488 = vld [vmem:[#allocation2 + $0x54] sm:$0xf]
    %v489 = vld [vmem:[#allocation2 + $0x58] sm:$0xf]
    %v490 = vld [vmem:[#allocation2 + $0x5c] sm:$0xf]
    %v491 = vld [vmem:[#allocation2 + $0x60] sm:$0xf]
    %v492 = vld [vmem:[#allocation2 + $0x64] sm:$0xf]
    %v493 = vld [vmem:[#allocation2 + $0x68] sm:$0xf]
    %v494 = vld [vmem:[#allocation2 + $0x6c] sm:$0xf]
    %v495 = vld [vmem:[#allocation2 + $0x70] sm:$0xf]
    %v496 = vld [vmem:[#allocation2 + $0x74] sm:$0xf]
    %v497 = vld [vmem:[#allocation2 + $0x78] sm:$0xf]
    %v498 = vld [vmem:[#allocation2 + $0x7c] sm:$0xf]
    %v515 = vunpack.c.l.b16 %v483
    %v516 = vunpack.c.l.b16 %v484
    %v517 = vunpack.c.l.b16 %v485
    %v518 = vunpack.c.l.b16 %v486
    %v519 = vunpack.c.l.b16 %v487
    %v520 = vunpack.c.l.b16 %v488
    %v521 = vunpack.c.l.b16 %v489
    %v522 = vunpack.c.l.b16 %v490
    %v523 = vunpack.c.l.b16 %v491
    %v524 = vunpack.c.l.b16 %v492
    %v525 = vunpack.c.l.b16 %v493
    %v526 = vunpack.c.l.b16 %v494
    %v527 = vunpack.c.l.b16 %v495
    %v528 = vunpack.c.l.b16 %v496
    %v529 = vunpack.c.l.b16 %v497
    %v530 = vunpack.c.l.b16 %v498
    %v531 = vpack.c.b16 %v516, %v515
    %v532 = vpack.c.b16 %v518, %v517
    %v533 = vpack.c.b16 %v520, %v519
    %v534 = vpack.c.b16 %v522, %v521
    %v535 = vpack.c.b16 %v524, %v523
    %v536 = vpack.c.b16 %v526, %v525
    %v537 = vpack.c.b16 %v528, %v527
    %v538 = vpack.c.b16 %v530, %v529
    %547 = vmatprep.subr.bf16.mxu0 0
    %548 = vmatpush1.bf16.msra.mxu0 %v531
    %549 = vmatprep.subr.bf16.mxu0 0
    %550 = vmatpush1.bf16.msra.mxu0 %v532
    %551 = vmatprep.subr.bf16.mxu0 0
    %552 = vmatpush1.bf16.msra.mxu0 %v533
    %553 = vmatprep.subr.bf16.mxu0 0
    %554 = vmatpush1.bf16.msra.mxu0 %v534
    %555 = vmatprep.subr.bf16.mxu0 0
    %556 = vmatpush1.bf16.msra.mxu0 %v535
    %557 = vmatprep.subr.bf16.mxu0 0
    %558 = vmatpush1.bf16.msra.mxu0 %v536
    %559 = vmatprep.subr.bf16.mxu0 0
    %560 = vmatpush1.bf16.msra.mxu0 %v537
    %561 = vmatprep.subr.bf16.mxu0 0
    %562 = vmatpush1.bf16.msra.mxu0 %v538
    %563 = vmatprep.subr.bf16.mxu0 0
    %564 = vmatpush1.bf16.msra.mxu0 0
    %565 = vmatprep.subr.bf16.mxu0 0
    %566 = vmatpush1.bf16.msra.mxu0 0
    %567 = vmatprep.subr.bf16.mxu0 0
    %568 = vmatpush1.bf16.msra.mxu0 0
    %569 = vmatprep.subr.bf16.mxu0 0
    %570 = vmatpush1.bf16.msra.mxu0 0
    %571 = vmatprep.subr.bf16.mxu0 0
    %572 = vmatpush1.bf16.msra.mxu0 0
    %573 = vmatprep.subr.bf16.mxu0 0
    %574 = vmatpush1.bf16.msra.mxu0 0
    %575 = vmatprep.subr.bf16.mxu0 0
    %576 = vmatpush1.bf16.msra.mxu0 0
    %577 = vmatprep.subr.bf16.mxu0 0
    %578 = vmatpush1.bf16.msra.mxu0 0
    %579 = vmatprep.mubr.bf16.mxu0 0
    %580 = vmatmul.mubr.bf16.gmra.mrb[0].mxu0 %v466
    %v581 = vpop.f32.mrb[0].mxu0
    %v582 = vadd.f32 0.0, %v581
    %v583 = vpop.f32.mrb[0].mxu0
    %v584 = vpop.f32.mrb[0].mxu0
    %v585 = vadd.f32 0.0, %v584
    %v586 = vpop.f32.mrb[0].mxu0
    %587 = vdwg.mxu0
    %v604 = vunpack.c.l.b16 %v467
    %v605 = vunpack.c.l.b16 %v468
    %v606 = vunpack.c.l.b16 %v469
    %v607 = vunpack.c.l.b16 %v470
    %v608 = vunpack.c.l.b16 %v471
    %v609 = vunpack.c.l.b16 %v472
    %v610 = vunpack.c.l.b16 %v473
    %v611 = vunpack.c.l.b16 %v474
    %v612 = vunpack.c.l.b16 %v475
    %v613 = vunpack.c.l.b16 %v476
    %v614 = vunpack.c.l.b16 %v477
    %v615 = vunpack.c.l.b16 %v478
    %v616 = vunpack.c.l.b16 %v479
    %v617 = vunpack.c.l.b16 %v480
    %v618 = vunpack.c.l.b16 %v481
    %v619 = vunpack.c.l.b16 %v482
    %v620 = vpack.c.b16 %v605, %v604
    %v621 = vpack.c.b16 %v607, %v606
    %v622 = vpack.c.b16 %v609, %v608
    %v623 = vpack.c.b16 %v611, %v610
    %v624 = vpack.c.b16 %v613, %v612
    %v625 = vpack.c.b16 %v615, %v614
    %v626 = vpack.c.b16 %v617, %v616
    %v627 = vpack.c.b16 %v619, %v618
    %636 = vmatprep.subr.bf16.mxu0 0
    %637 = vmatpush1.bf16.msra.mxu0 %v620
    %638 = vmatprep.subr.bf16.mxu0 0
    %639 = vmatpush1.bf16.msra.mxu0 %v621
    %640 = vmatprep.subr.bf16.mxu0 0
    %641 = vmatpush1.bf16.msra.mxu0 %v622
    %642 = vmatprep.subr.bf16.mxu0 0
    %643 = vmatpush1.bf16.msra.mxu0 %v623
    %644 = vmatprep.subr.bf16.mxu0 0
    %645 = vmatpush1.bf16.msra.mxu0 %v624
    %646 = vmatprep.subr.bf16.mxu0 0
    %647 = vmatpush1.bf16.msra.mxu0 %v625
    %648 = vmatprep.subr.bf16.mxu0 0
    %649 = vmatpush1.bf16.msra.mxu0 %v626
    %650 = vmatprep.subr.bf16.mxu0 0
    %651 = vmatpush1.bf16.msra.mxu0 %v627
    %652 = vmatprep.subr.bf16.mxu0 0
    %653 = vmatpush1.bf16.msra.mxu0 0
    %654 = vmatprep.subr.bf16.mxu0 0
    %655 = vmatpush1.bf16.msra.mxu0 0
    %656 = vmatprep.subr.bf16.mxu0 0
    %657 = vmatpush1.bf16.msra.mxu0 0
    %658 = vmatprep.subr.bf16.mxu0 0
    %659 = vmatpush1.bf16.msra.mxu0 0
    %660 = vmatprep.subr.bf16.mxu0 0
    %661 = vmatpush1.bf16.msra.mxu0 0
    %662 = vmatprep.subr.bf16.mxu0 0
    %663 = vmatpush1.bf16.msra.mxu0 0
    %664 = vmatprep.subr.bf16.mxu0 0
    %665 = vmatpush1.bf16.msra.mxu0 0
    %666 = vmatprep.subr.bf16.mxu0 0
    %667 = vmatpush1.bf16.msra.mxu0 0
    %668 = vmatprep.mubr.bf16.mxu0 0
    %669 = vmatmul.mubr.bf16.gmra.mrb[0].mxu0 %v257
    %v670 = vpop.f32.mrb[0].mxu0
    %v671 = vadd.f32 %v582, %v670
    %v672 = vpop.f32.mrb[0].mxu0
    %v673 = vpop.f32.mrb[0].mxu0
    %v674 = vadd.f32 %v585, %v673
    %v675 = vpop.f32.mrb[0].mxu0
    %676 = vdwg.mxu0
    %677 = vst [vmem:[#allocation5] sm:$0xff] %v671
    %678 = vst [vmem:[#allocation5 + $0x8] sm:$0xff] %v674
    // Predicated region
    $region18: #{tpu_custom_call.1} parent=1 // pred_check
      _
    $region19: #{tpu_custom_call.1} parent=1 // pred_check_branch
      %680 = sbr.rel (0) target = $region21
    $region20: #{tpu_custom_call.1} parent=1 // pred_region
      %s682 = ssub.s32 256, 256
      %683 = vsyncadd [#allocation4], %s682
      %s684 = sshll.u32 [#allocation5], 4
      %s685 = int_to_ptr.vmem [resolvable:$true] %s684
      %690 = dma.vmem_to_hbm [thread:$0]  %s685, 256, %s3, [#allocation4], 128, 128, 8
    $region21: #{tpu_custom_call.1} parent=1 // pred_fallthru
      _
    // Predicated region
    $region22: #{tpu_custom_call.1} parent=1 // pred_check
      _
    $region23: #{tpu_custom_call.1} parent=1 // pred_check_branch
      %692 = sbr.rel (0) target = $region25
    $region24: #{tpu_custom_call.1} parent=1 // pred_region
      %693 = dma.done [#allocation4], 256
    $region25: #{tpu_custom_call.1} parent=1 // pred_fallthru
      _
    %694 = vsyncpa [#allocation3], 1
    %695 = vsyncpa [#allocation4], 1

</llo_original>
